<compile_context>
chip_gen: v7x
topology: tpu7x:2x2x1
jax: 0.10.0
libtpu: 0.0.40
codegen_flags: <defaults>
</compile_context>

<pallas_src>
import jax
import jax.numpy as jnp
from jax.experimental import pallas as pl
from jax.experimental.pallas import tpu as pltpu

IN_FEATURES = 3
OUT_FEATURES = 4
_LANE = 128
_SUBLANE_TILE = 1024        # 8 sublanes * 128 lanes = one full f32 vreg
_MAX_BATCH_TILE = 32768     # lanes (batch columns) per grid step; mult of 1024


def _round_up(n, m):
    return ((n + m - 1) // m) * m


def _batch_tiling(B):
    """Return (bp, bt): padded batch and per-step batch tile (both in lanes)."""
    bp_min = _round_up(max(B, 1), _LANE)
    if bp_min <= _MAX_BATCH_TILE:
        # Single grid step; block covers the full padded batch extent, so no
        # (8,128) divisibility constraint applies to the sublane dim.
        return bp_min, bp_min
    bt = _MAX_BATCH_TILE                      # multiple of 1024 -> dense vregs
    return _round_up(B, bt), bt


def _linear_kernel(w_ref, b_ref, x_ref, o_ref):
    """y^T[o] = b[o] + sum_k w[o,k] * x^T[k]   (pure VPU FMAs, no MXU).

    w_ref: (12,) f32 SMEM   -- weight flattened row-major from (OUT, IN)
    b_ref: (4,)  f32 SMEM
    x_ref: (IN,  bt//128, 128) f32 VMEM   -- batch packed into dense vregs
    o_ref: (OUT, bt//128, 128) f32 VMEM
    """
    # Load each feature slab once as a dense (bt//128, 128) stack of full
    # vregs; reuse for all four output rows.
    xs = [x_ref[k] for k in range(IN_FEATURES)]
    for o in range(OUT_FEATURES):
        acc = b_ref[o] + w_ref[o * IN_FEATURES + 0] * xs[0]
        for k in range(1, IN_FEATURES):
            acc = acc + w_ref[o * IN_FEATURES + k] * xs[k]
        o_ref[o] = acc  # full-vreg, unmasked stores


def testnet_forward(x, weight, bias):
    """x: (B, 3) f32, weight: (4, 3) f32 (PyTorch layout), bias: (4,) f32.

    Returns y = x @ weight.T + bias with shape (B, 4).
    """
    x = jnp.asarray(x, jnp.float32)
    weight = jnp.asarray(weight, jnp.float32)
    bias = jnp.asarray(bias, jnp.float32)

    B = x.shape[0]
    out_f, in_f = weight.shape
    bp, bt = _batch_tiling(B)

    # Layout glue in plain JAX: feature-major, batch packed (sublane, lane)
    # dense and zero-padded to bp columns.
    x_t = jnp.zeros((in_f, bp), jnp.float32).at[:, :B].set(x.T)
    x_t3 = x_t.reshape(in_f, bp // _LANE, _LANE)

    y_t3 = pl.pallas_call(
        _linear_kernel,
        out_shape=jax.ShapeDtypeStruct((out_f, bp // _LANE, _LANE),
                                       jnp.float32),
        grid=(bp // bt,),
        in_specs=[
            pl.BlockSpec(memory_space=pltpu.MemorySpace.SMEM),   # weight (12,)
            pl.BlockSpec(memory_space=pltpu.MemorySpace.SMEM),   # bias   (4,)
            pl.BlockSpec((in_f, bt // _LANE, _LANE),
                         lambda i: (0, i, 0)),                   # x^T tile
        ],
        out_specs=pl.BlockSpec((out_f, bt // _LANE, _LANE),
                               lambda i: (0, i, 0)),             # y^T tile
        compiler_params=pltpu.CompilerParams(
            dimension_semantics=("parallel",)),
    )(weight.reshape(-1), bias, x_t3)

    # Drop lane padding and return in the PyTorch (B, out_features) layout.
    y_t = y_t3.reshape(out_f, bp)
    return y_t[:, :B].T


if __name__ == "__main__":
    key = jax.random.PRNGKey(0)
    kx, kw, kb = jax.random.split(key, 3)

    B = 8
    x = jax.random.normal(kx, (B, IN_FEATURES), dtype=jnp.float32)

    # Deterministic params mirroring nn.Linear's uniform(-1/sqrt(in), 1/sqrt(in)).
    bound = 1.0 / (IN_FEATURES ** 0.5)
    weight = jax.random.uniform(
        kw, (OUT_FEATURES, IN_FEATURES), jnp.float32, -bound, bound)
    bias = jax.random.uniform(kb, (OUT_FEATURES,), jnp.float32, -bound, bound)

    y = testnet_forward(x, weight, bias)
    jax.block_until_ready(y)

    # Pure-JAX reference (same semantics as PyTorch: x @ W^T + b).
    y_ref = x @ weight.T + bias
    assert y.shape == (B, OUT_FEATURES)
    assert jnp.allclose(y, y_ref, atol=1e-5, rtol=1e-5)

    print("KERNEL_OK")
</pallas_src>

<mosaic_0001>
module attributes {stable_mosaic.version = 11 : i64} {
  func.func @_linear_kernel(%arg0: i32, %arg1: memref<12xf32, #tpu.memory_space<smem>>, %arg2: memref<4xf32, #tpu.memory_space<smem>>, %arg3: memref<3x1x128xf32, #tpu.memory_space<vmem>>, %arg4: memref<4x1x128xf32, #tpu.memory_space<vmem>>) attributes {dimension_semantics = [#tpu.dimension_semantics<parallel>], iteration_bounds = array<i64: 1>, scalar_prefetch = 0 : i64, scratch_operands = 0 : i64, tpu.core_type = #tpu.core_type<tc>, window_params = [{transform_indices = @transform_0, window_bounds = array<i64: 12>}, {transform_indices = @transform_1, window_bounds = array<i64: 4>}, {transform_indices = @transform_2, window_bounds = array<i64: 3, 1, 128>}, {transform_indices = @transform_3, window_bounds = array<i64: 4, 1, 128>}]} {
    %c0 = arith.constant 0 : index
    %c0_0 = arith.constant 0 : index
    %c0_1 = arith.constant 0 : index
    %0 = vector.load %arg3[%c0, %c0_0, %c0_1] : memref<3x1x128xf32, #tpu.memory_space<vmem>>, vector<1x1x128xf32>
    %1 = vector.shape_cast %0 : vector<1x1x128xf32> to vector<1x128xf32>
    %c1 = arith.constant 1 : index
    %c0_2 = arith.constant 0 : index
    %c0_3 = arith.constant 0 : index
    %2 = vector.load %arg3[%c1, %c0_2, %c0_3] : memref<3x1x128xf32, #tpu.memory_space<vmem>>, vector<1x1x128xf32>
    %3 = vector.shape_cast %2 : vector<1x1x128xf32> to vector<1x128xf32>
    %c2 = arith.constant 2 : index
    %c0_4 = arith.constant 0 : index
    %c0_5 = arith.constant 0 : index
    %4 = vector.load %arg3[%c2, %c0_4, %c0_5] : memref<3x1x128xf32, #tpu.memory_space<vmem>>, vector<1x1x128xf32>
    %5 = vector.shape_cast %4 : vector<1x1x128xf32> to vector<1x128xf32>
    %c0_6 = arith.constant 0 : index
    %6 = memref.load %arg2[%c0_6] : memref<4xf32, #tpu.memory_space<smem>>
    %c0_7 = arith.constant 0 : index
    %7 = memref.load %arg1[%c0_7] : memref<12xf32, #tpu.memory_space<smem>>
    %8 = vector.broadcast %7 : f32 to vector<1x128xf32>
    %9 = arith.mulf %8, %1 : vector<1x128xf32>
    %10 = vector.broadcast %6 : f32 to vector<1x128xf32>
    %11 = arith.addf %10, %9 : vector<1x128xf32>
    %c1_8 = arith.constant 1 : index
    %12 = memref.load %arg1[%c1_8] : memref<12xf32, #tpu.memory_space<smem>>
    %13 = vector.broadcast %12 : f32 to vector<1x128xf32>
    %14 = arith.mulf %13, %3 : vector<1x128xf32>
    %15 = arith.addf %11, %14 : vector<1x128xf32>
    %c2_9 = arith.constant 2 : index
    %16 = memref.load %arg1[%c2_9] : memref<12xf32, #tpu.memory_space<smem>>
    %17 = vector.broadcast %16 : f32 to vector<1x128xf32>
    %18 = arith.mulf %17, %5 : vector<1x128xf32>
    %19 = arith.addf %15, %18 : vector<1x128xf32>
    %c0_10 = arith.constant 0 : index
    %c0_11 = arith.constant 0 : index
    %c0_12 = arith.constant 0 : index
    %20 = vector.load %arg4[%c0_10, %c0_11, %c0_12] : memref<4x1x128xf32, #tpu.memory_space<vmem>>, vector<1x1x128xf32>
    %21 = vector.shape_cast %20 : vector<1x1x128xf32> to vector<1x128xf32>
    %22 = vector.shape_cast %19 : vector<1x128xf32> to vector<1x1x128xf32>
    tpu.vector_store %arg4[%c0_10, %c0_11, %c0_12], %22 {strides = array<i32>} : memref<4x1x128xf32, #tpu.memory_space<vmem>>, vector<1x1x128xf32>,
    %c1_13 = arith.constant 1 : index
    %23 = memref.load %arg2[%c1_13] : memref<4xf32, #tpu.memory_space<smem>>
    %c3 = arith.constant 3 : index
    %24 = memref.load %arg1[%c3] : memref<12xf32, #tpu.memory_space<smem>>
    %25 = vector.broadcast %24 : f32 to vector<1x128xf32>
    %26 = arith.mulf %25, %1 : vector<1x128xf32>
    %27 = vector.broadcast %23 : f32 to vector<1x128xf32>
    %28 = arith.addf %27, %26 : vector<1x128xf32>
    %c4 = arith.constant 4 : index
    %29 = memref.load %arg1[%c4] : memref<12xf32, #tpu.memory_space<smem>>
    %30 = vector.broadcast %29 : f32 to vector<1x128xf32>
    %31 = arith.mulf %30, %3 : vector<1x128xf32>
    %32 = arith.addf %28, %31 : vector<1x128xf32>
    %c5 = arith.constant 5 : index
    %33 = memref.load %arg1[%c5] : memref<12xf32, #tpu.memory_space<smem>>
    %34 = vector.broadcast %33 : f32 to vector<1x128xf32>
    %35 = arith.mulf %34, %5 : vector<1x128xf32>
    %36 = arith.addf %32, %35 : vector<1x128xf32>
    %c1_14 = arith.constant 1 : index
    %c0_15 = arith.constant 0 : index
    %c0_16 = arith.constant 0 : index
    %37 = vector.load %arg4[%c1_14, %c0_15, %c0_16] : memref<4x1x128xf32, #tpu.memory_space<vmem>>, vector<1x1x128xf32>
    %38 = vector.shape_cast %37 : vector<1x1x128xf32> to vector<1x128xf32>
    %39 = vector.shape_cast %36 : vector<1x128xf32> to vector<1x1x128xf32>
    tpu.vector_store %arg4[%c1_14, %c0_15, %c0_16], %39 {strides = array<i32>} : memref<4x1x128xf32, #tpu.memory_space<vmem>>, vector<1x1x128xf32>,
    %c2_17 = arith.constant 2 : index
    %40 = memref.load %arg2[%c2_17] : memref<4xf32, #tpu.memory_space<smem>>
    %c6 = arith.constant 6 : index
    %41 = memref.load %arg1[%c6] : memref<12xf32, #tpu.memory_space<smem>>
    %42 = vector.broadcast %41 : f32 to vector<1x128xf32>
    %43 = arith.mulf %42, %1 : vector<1x128xf32>
    %44 = vector.broadcast %40 : f32 to vector<1x128xf32>
    %45 = arith.addf %44, %43 : vector<1x128xf32>
    %c7 = arith.constant 7 : index
    %46 = memref.load %arg1[%c7] : memref<12xf32, #tpu.memory_space<smem>>
    %47 = vector.broadcast %46 : f32 to vector<1x128xf32>
    %48 = arith.mulf %47, %3 : vector<1x128xf32>
    %49 = arith.addf %45, %48 : vector<1x128xf32>
    %c8 = arith.constant 8 : index
    %50 = memref.load %arg1[%c8] : memref<12xf32, #tpu.memory_space<smem>>
    %51 = vector.broadcast %50 : f32 to vector<1x128xf32>
    %52 = arith.mulf %51, %5 : vector<1x128xf32>
    %53 = arith.addf %49, %52 : vector<1x128xf32>
    %c2_18 = arith.constant 2 : index
    %c0_19 = arith.constant 0 : index
    %c0_20 = arith.constant 0 : index
    %54 = vector.load %arg4[%c2_18, %c0_19, %c0_20] : memref<4x1x128xf32, #tpu.memory_space<vmem>>, vector<1x1x128xf32>
    %55 = vector.shape_cast %54 : vector<1x1x128xf32> to vector<1x128xf32>
    %56 = vector.shape_cast %53 : vector<1x128xf32> to vector<1x1x128xf32>
    tpu.vector_store %arg4[%c2_18, %c0_19, %c0_20], %56 {strides = array<i32>} : memref<4x1x128xf32, #tpu.memory_space<vmem>>, vector<1x1x128xf32>,
    %c3_21 = arith.constant 3 : index
    %57 = memref.load %arg2[%c3_21] : memref<4xf32, #tpu.memory_space<smem>>
    %c9 = arith.constant 9 : index
    %58 = memref.load %arg1[%c9] : memref<12xf32, #tpu.memory_space<smem>>
    %59 = vector.broadcast %58 : f32 to vector<1x128xf32>
    %60 = arith.mulf %59, %1 : vector<1x128xf32>
    %61 = vector.broadcast %57 : f32 to vector<1x128xf32>
    %62 = arith.addf %61, %60 : vector<1x128xf32>
    %c10 = arith.constant 10 : index
    %63 = memref.load %arg1[%c10] : memref<12xf32, #tpu.memory_space<smem>>
    %64 = vector.broadcast %63 : f32 to vector<1x128xf32>
    %65 = arith.mulf %64, %3 : vector<1x128xf32>
    %66 = arith.addf %62, %65 : vector<1x128xf32>
    %c11 = arith.constant 11 : index
    %67 = memref.load %arg1[%c11] : memref<12xf32, #tpu.memory_space<smem>>
    %68 = vector.broadcast %67 : f32 to vector<1x128xf32>
    %69 = arith.mulf %68, %5 : vector<1x128xf32>
    %70 = arith.addf %66, %69 : vector<1x128xf32>
    %c3_22 = arith.constant 3 : index
    %c0_23 = arith.constant 0 : index
    %c0_24 = arith.constant 0 : index
    %71 = vector.load %arg4[%c3_22, %c0_23, %c0_24] : memref<4x1x128xf32, #tpu.memory_space<vmem>>, vector<1x1x128xf32>
    %72 = vector.shape_cast %71 : vector<1x1x128xf32> to vector<1x128xf32>
    %73 = vector.shape_cast %70 : vector<1x128xf32> to vector<1x1x128xf32>
    tpu.vector_store %arg4[%c3_22, %c0_23, %c0_24], %73 {strides = array<i32>} : memref<4x1x128xf32, #tpu.memory_space<vmem>>, vector<1x1x128xf32>,
    return
  }
  func.func @transform_0(%arg0: i32) -> i32 {
    %c0_i32 = arith.constant 0 : i32
    %c0_i32_0 = arith.constant 0 : i32
    return %c0_i32 : i32
  }
  func.func @transform_1(%arg0: i32) -> i32 {
    %c0_i32 = arith.constant 0 : i32
    %c0_i32_0 = arith.constant 0 : i32
    return %c0_i32 : i32
  }
  func.func @transform_2(%arg0: i32) -> (i32, i32, i32) {
    %c0_i32 = arith.constant 0 : i32
    %c0_i32_0 = arith.constant 0 : i32
    %c0_i32_1 = arith.constant 0 : i32
    return %c0_i32, %arg0, %c0_i32_0 : i32, i32, i32
  }
  func.func @transform_3(%arg0: i32) -> (i32, i32, i32) {
    %c0_i32 = arith.constant 0 : i32
    %c0_i32_0 = arith.constant 0 : i32
    %c0_i32_1 = arith.constant 0 : i32
    return %c0_i32, %arg0, %c0_i32_0 : i32, i32, i32
  }
}

</mosaic_0001>

<llo_original>
// kernel: tpu_custom_call.1
$region0: #{tpu_custom_call.1}
  #allocation0 [shape = 'u32[]', space=smem, size = 0x4, offset = 0x4, fixed_abs, tag = 'smem constant byte address 0x4 - core index']
  #allocation1 [shape = 'u32[144,128]{1,0:T(1,128)}', space=vmem, size = 0x12000, scoped, tag = 'internal scratch']
  %s0 = inlined_call_operand.hbm [shape: f32[12], index: 0, kind: input, shape index: {}]
  %s1 = inlined_call_operand.vmem [shape: f32[4], index: 1, kind: input, shape index: {}]
  %s2 = inlined_call_operand.vmem [shape: f32[3,1,128], index: 2, kind: input, shape index: {}]
  %s3 = inlined_call_operand.hbm [shape: f32[4,1,128], index: 3, kind: output, shape index: {}]
  %s4 = sld [smem:[#allocation0]]
  $region30: #{tpu_custom_call.1} parent=0
    _
  %s6 = ssub.s32 1, %s4
  %s7 = scalar_select 0, %s6, %s4
  $region1: #{tpu_custom_call.1} parent=0
    #allocation2 [shape = 'u8[512]{0}', space=smem, size = 0x200, scoped, tag = 'input window, operand 0, single buffered']
    #allocation3 [shape = 's32[1]{0}', space=sflag, size = 0x4, scoped, tag = 'scoped memory for tpu_custom_call.1']
    #allocation4 [shape = 's32[1]{0}', space=sflag, size = 0x4, scoped, tag = 'scoped memory for tpu_custom_call.1']
    #allocation5 [shape = 's32[1]{0}', space=sflag, size = 0x4, scoped, tag = 'scoped memory for tpu_custom_call.1']
    #allocation6 [shape = 'u8[512]{0}', space=smem, size = 0x200, scoped, tag = 'input window, operand 1, single buffered']
    #allocation7 [shape = 'u8[2048]{0}', space=vmem, size = 0x800, scoped, tag = 'output window, operand 0, single buffered']
    %8 = vsyncpa [#allocation4], 0
    %9 = vsyncpa [#allocation5], 0
    %10 = vsyncpa [#allocation3], 0
    // Predicated region
    $region2: #{tpu_custom_call.1} parent=1 // pred_check
      _
    $region3: #{tpu_custom_call.1} parent=1 // pred_check_branch
      %12 = sbr.rel (0) target = $region5
    $region4: #{tpu_custom_call.1} parent=1 // pred_region
      %s14 = ssub.s32 16, 16
      %15 = vsyncadd [#allocation4], %s14
      %18 = dma.hbm_to_smem %s0, 16, [#allocation2], [#allocation4]
    $region5: #{tpu_custom_call.1} parent=1 // pred_fallthru
      _
    // Predicated region
    $region6: #{tpu_custom_call.1} parent=1 // pred_check
      _
    $region7: #{tpu_custom_call.1} parent=1 // pred_check_branch
      %20 = sbr.rel (0) target = $region9
    $region8: #{tpu_custom_call.1} parent=1 // pred_region
      %s22 = ssub.s32 16, 16
      %23 = vsyncadd [#allocation5], %s22
      %s25 = sshll.u32 %s1, 4
      %s26 = int_to_ptr.vmem [resolvable:$true] %s25
      %28 = dma.vmem_to_smem %s26, 16, [#allocation6], [#allocation5]
    $region9: #{tpu_custom_call.1} parent=1 // pred_fallthru
      _
    // Predicated region
    $region10: #{tpu_custom_call.1} parent=1 // pred_check
      _
    $region11: #{tpu_custom_call.1} parent=1 // pred_check_branch
      %30 = sbr.rel (0) target = $region13
    $region12: #{tpu_custom_call.1} parent=1 // pred_region
      _
    $region13: #{tpu_custom_call.1} parent=1 // pred_fallthru
      _
    // Predicated region
    $region14: #{tpu_custom_call.1} parent=1 // pred_check
      _
    $region15: #{tpu_custom_call.1} parent=1 // pred_check_branch
      %32 = sbr.rel (0) target = $region17
    $region16: #{tpu_custom_call.1} parent=1 // pred_region
      %33 = dma.done [#allocation4], 16
    $region17: #{tpu_custom_call.1} parent=1 // pred_fallthru
      _
    // Predicated region
    $region18: #{tpu_custom_call.1} parent=1 // pred_check
      _
    $region19: #{tpu_custom_call.1} parent=1 // pred_check_branch
      %35 = sbr.rel (0) target = $region21
    $region20: #{tpu_custom_call.1} parent=1 // pred_region
      %36 = dma.done [#allocation5], 16
    $region21: #{tpu_custom_call.1} parent=1 // pred_fallthru
      _
    %37 = sfence
    %v38 = vld [vmem:[%s2] sm:$0x1]
    %s39 = scalar_lea.vmem %s2, 1
    %v40 = vld [vmem:[%s39] sm:$0x1]
    %s41 = scalar_lea.vmem %s2, 2
    %v42 = vld [vmem:[%s41] sm:$0x1]
    %s43 = sld [smem:[#allocation6]]
    %s44 = sld [smem:[#allocation2]]
    %v45 = vstv %s44
    %v46 = vmul.f32 %v45, %v38
    %v47 = vstv %s43
    %v48 = vadd.f32 %v47, %v46
    %s49 = sld [smem:[#allocation2 + $0x1]]
    %v50 = vstv %s49
    %v51 = vmul.f32 %v50, %v40
    %v52 = vadd.f32 %v48, %v51
    %s53 = sld [smem:[#allocation2 + $0x2]]
    %v54 = vstv %s53
    %v55 = vmul.f32 %v54, %v42
    %v56 = vadd.f32 %v52, %v55
    %57 = vst [vmem:[#allocation7] sm:$0x1] %v56
    %s58 = sld [smem:[#allocation6 + $0x1]]
    %s59 = sld [smem:[#allocation2 + $0x3]]
    %v60 = vstv %s59
    %v61 = vmul.f32 %v60, %v38
    %v62 = vstv %s58
    %v63 = vadd.f32 %v62, %v61
    %s64 = sld [smem:[#allocation2 + $0x4]]
    %v65 = vstv %s64
    %v66 = vmul.f32 %v65, %v40
    %v67 = vadd.f32 %v63, %v66
    %s68 = sld [smem:[#allocation2 + $0x5]]
    %v69 = vstv %s68
    %v70 = vmul.f32 %v69, %v42
    %v71 = vadd.f32 %v67, %v70
    %s72 = scalar_lea.vmem [#allocation7], 1
    %73 = vst [vmem:[%s72] sm:$0x1] %v71
    %s74 = sld [smem:[#allocation6 + $0x2]]
    %s75 = sld [smem:[#allocation2 + $0x6]]
    %v76 = vstv %s75
    %v77 = vmul.f32 %v76, %v38
    %v78 = vstv %s74
    %v79 = vadd.f32 %v78, %v77
    %s80 = sld [smem:[#allocation2 + $0x7]]
    %v81 = vstv %s80
    %v82 = vmul.f32 %v81, %v40
    %v83 = vadd.f32 %v79, %v82
    %s84 = sld [smem:[#allocation2 + $0x8]]
    %v85 = vstv %s84
    %v86 = vmul.f32 %v85, %v42
    %v87 = vadd.f32 %v83, %v86
    %s88 = scalar_lea.vmem [#allocation7], 2
    %89 = vst [vmem:[%s88] sm:$0x1] %v87
    %s90 = sld [smem:[#allocation6 + $0x3]]
    %s91 = sld [smem:[#allocation2 + $0x9]]
    %v92 = vstv %s91
    %v93 = vmul.f32 %v92, %v38
    %v94 = vstv %s90
    %v95 = vadd.f32 %v94, %v93
    %s96 = sld [smem:[#allocation2 + $0xa]]
    %v97 = vstv %s96
    %v98 = vmul.f32 %v97, %v40
    %v99 = vadd.f32 %v95, %v98
    %s100 = sld [smem:[#allocation2 + $0xb]]
    %v101 = vstv %s100
    %v102 = vmul.f32 %v101, %v42
    %v103 = vadd.f32 %v99, %v102
    %s104 = scalar_lea.vmem [#allocation7], 3
    %105 = vst [vmem:[%s104] sm:$0x1] %v103
    // Predicated region
    $region22: #{tpu_custom_call.1} parent=1 // pred_check
      _
    $region23: #{tpu_custom_call.1} parent=1 // pred_check_branch
      %107 = sbr.rel (0) target = $region25
    $region24: #{tpu_custom_call.1} parent=1 // pred_region
      %s109 = ssub.s32 64, 64
      %110 = vsyncadd [#allocation3], %s109
      %s111 = sshll.u32 [#allocation7], 4
      %s112 = int_to_ptr.vmem [resolvable:$true] %s111
      %117 = dma.vmem_to_hbm [thread:$0]  %s112, 64, %s3, [#allocation3], 16, 16, 1
    $region25: #{tpu_custom_call.1} parent=1 // pred_fallthru
      _
    // Predicated region
    $region26: #{tpu_custom_call.1} parent=1 // pred_check
      _
    $region27: #{tpu_custom_call.1} parent=1 // pred_check_branch
      %119 = sbr.rel (0) target = $region29
    $region28: #{tpu_custom_call.1} parent=1 // pred_region
      %120 = dma.done [#allocation3], 64
    $region29: #{tpu_custom_call.1} parent=1 // pred_fallthru
      _
    %121 = vsyncpa [#allocation3], 1
    %122 = vsyncpa [#allocation4], 1
    %123 = vsyncpa [#allocation5], 1

</llo_original>
